<compile_context>
chip_gen: v7x
topology: tpu7x:2x2x1
jax: 0.10.0
libtpu: 0.0.40
codegen_flags: <defaults>
</compile_context>

<pallas_src>
import functools

import jax
import jax.numpy as jnp
from jax.experimental import pallas as pl
from jax.experimental.pallas import tpu as pltpu


def _round_up(x, m):
    return ((x + m - 1) // m) * m


def _num_tensorcores():
    """Best-effort TensorCore count per device (2 on v7x / megacore, else 1)."""
    try:
        dev = jax.devices()[0]
        n = getattr(dev, "num_cores", None)
        if n:
            return max(int(n), 1)
        kind = str(getattr(dev, "device_kind", "")).lower()
        if any(tag in kind for tag in ("v7", "v4", "v5p")):
            return 2
    except Exception:
        pass
    return 1


def _default_tm(batch, num_cores):
    """Row-tile: >=1 tile per TensorCore, 16-row aligned, capped at 512 rows."""
    batch_p = _round_up(batch, 16)
    tm = (batch_p + num_cores - 1) // num_cores
    tm = _round_up(tm, 16)
    return min(tm, 512)


# --------------------------------------------------------------------------
# Kernel
# --------------------------------------------------------------------------
def simplenet_kernel(x_ref, w1_ref, b1_ref, w2_ref, b2_ref, w3_ref, b3_ref,
                     out_ref):
    # x arrives f32; cast to bf16 in VMEM (VPU cast hides under MXU/DMA).
    x = x_ref[...].astype(jnp.bfloat16)
    # hidden1: Linear + ReLU (bf16 matmul inputs, f32 accumulate/bias/ReLU)
    h1 = jnp.dot(x, w1_ref[...], preferred_element_type=jnp.float32)
    h1 = jnp.maximum(h1 + b1_ref[...], 0.0)
    # hidden2: Linear + ReLU
    h2 = jnp.dot(h1.astype(jnp.bfloat16), w2_ref[...],
                 preferred_element_type=jnp.float32)
    h2 = jnp.maximum(h2 + b2_ref[...], 0.0)
    # predict: Linear (no activation); output width is padded to 128 lanes so
    # the store is an unmasked, lane-dense vst.
    y = jnp.dot(h2.astype(jnp.bfloat16), w3_ref[...],
                preferred_element_type=jnp.float32)
    out_ref[...] = (y + b3_ref[...]).astype(out_ref.dtype)


# --------------------------------------------------------------------------
# Forward wrapper (runs under jax.jit; weights already prepared)
# --------------------------------------------------------------------------
def _forward(x, w1, b1, w2, b2, w3p, b3p, *, out_dim, tm=None):
    batch, in_dim = x.shape
    hidden1 = w1.shape[1]
    hidden2 = w2.shape[1]
    out_pad = w3p.shape[1]

    if tm is None:
        tm = _default_tm(batch, _num_tensorcores())
    tm = min(tm, _round_up(batch, 16))        # 16-row align (bf16 packing)
    batch_p = _round_up(batch, tm)
    if batch_p != batch:
        x = jnp.zeros((batch_p, in_dim), x.dtype).at[:batch].set(x)
    grid = (batch_p // tm,)

    # Weights/biases are VMEM-resident across the batch loop (constant maps).
    # NOTE: if hidden dims grow (e.g. >=4096), add pipeline_mode=pl.Buffered(1)
    # here and re-derive tiling against v7x's 64 MiB VMEM.
    def const_spec(a):
        return pl.BlockSpec(a.shape, lambda i: (0,) * a.ndim)

    # Cost estimate from the real (unpadded) batch / out_dim.
    flops = 2 * batch * (in_dim * hidden1 + hidden1 * hidden2
                         + hidden2 * out_dim)
    bytes_accessed = (4 * batch * in_dim                       # x (f32 in)
                      + 2 * (w1.size + w2.size + hidden2 * out_dim)
                      + 4 * (hidden1 + hidden2 + out_dim)      # biases
                      + 4 * batch * out_dim)                   # output

    out = pl.pallas_call(
        simplenet_kernel,
        out_shape=jax.ShapeDtypeStruct((batch_p, out_pad), jnp.float32),
        grid=grid,
        in_specs=[
            pl.BlockSpec((tm, in_dim), lambda i: (i, 0)),      # x row-tile
            const_spec(w1), const_spec(b1),
            const_spec(w2), const_spec(b2),
            const_spec(w3p), const_spec(b3p),
        ],
        out_specs=pl.BlockSpec((tm, out_pad), lambda i: (i, 0)),
        compiler_params=pltpu.CompilerParams(
            dimension_semantics=("parallel",)),
        cost_estimate=pl.CostEstimate(
            flops=flops, transcendentals=0, bytes_accessed=bytes_accessed),
    )(x, w1, b1, w2, b2, w3p, b3p)

    return out[:batch, :out_dim]


# --------------------------------------------------------------------------
# Param prep (done once) + jitted forward factory
# --------------------------------------------------------------------------
def prepare_params(params):
    """Cast weights to bf16 and pad the last layer to 128 lanes, once."""
    w1, b1, w2, b2, w3, b3 = params
    out_dim = w3.shape[1]
    out_pad = _round_up(out_dim, 128)
    w3p = jnp.zeros((w3.shape[0], out_pad), jnp.float32).at[:, :out_dim].set(w3)
    b3p = jnp.zeros((1, out_pad), jnp.float32).at[:, :out_dim].set(b3)
    prepped = (w1.astype(jnp.bfloat16), b1.astype(jnp.float32),
               w2.astype(jnp.bfloat16), b2.astype(jnp.float32),
               w3p.astype(jnp.bfloat16), b3p.astype(jnp.float32))
    return prepped, out_dim


def make_simplenet_forward(params, tm=None):
    """Prepare weights once; return a jitted forward fn x -> (batch, out_dim)."""
    prepped, out_dim = prepare_params(params)

    @jax.jit
    def forward(x):
        return _forward(x, *prepped, out_dim=out_dim, tm=tm)

    return forward


# --------------------------------------------------------------------------
# Init + references
# --------------------------------------------------------------------------
def init_params(key, in_dim, hidden1, hidden2, out_dim):
    """Deterministic init mimicking PyTorch nn.Linear (uniform +-1/sqrt(fan_in))."""
    ks = jax.random.split(key, 6)

    def linear(kw, kb, fan_in, fan_out):
        bound = 1.0 / jnp.sqrt(fan_in)
        # Stored as (in, out): transpose of PyTorch's (out, in) weight layout.
        w = jax.random.uniform(kw, (fan_in, fan_out), jnp.float32, -bound, bound)
        b = jax.random.uniform(kb, (1, fan_out), jnp.float32, -bound, bound)
        return w, b

    w1, b1 = linear(ks[0], ks[1], in_dim, hidden1)
    w2, b2 = linear(ks[2], ks[3], hidden1, hidden2)
    w3, b3 = linear(ks[4], ks[5], hidden2, out_dim)
    return (w1, b1, w2, b2, w3, b3)


def reference_forward_f32(x, params):
    """Full-f32 reference matching the original PyTorch SimpleNet forward."""
    w1, b1, w2, b2, w3, b3 = params
    h1 = jnp.maximum(x @ w1 + b1, 0.0)
    h2 = jnp.maximum(h1 @ w2 + b2, 0.0)
    return h2 @ w3 + b3


def reference_forward_bf16(x, params):
    """Reference mirroring the kernel's mixed precision (bf16 matmul, f32 accum)."""
    w1, b1, w2, b2, w3, b3 = params

    def mm(a, w):
        return jnp.dot(a.astype(jnp.bfloat16), w.astype(jnp.bfloat16),
                       preferred_element_type=jnp.float32)

    h1 = jnp.maximum(mm(x, w1) + b1, 0.0)
    h2 = jnp.maximum(mm(h1, w2) + b2, 0.0)
    return mm(h2, w3) + b3


if __name__ == "__main__":
    # Dims consistent with SimpleNet(in_dim, hidden1, hidden2, out_dim); batch
    # large enough to amortize launch cost and exercise the row-tile grid.
    batch, in_dim, hidden1, hidden2, out_dim = 256, 16, 32, 32, 4

    key = jax.random.PRNGKey(0)
    kx, kp = jax.random.split(key)
    x = jax.random.normal(kx, (batch, in_dim), dtype=jnp.float32)
    params = init_params(kp, in_dim, hidden1, hidden2, out_dim)

    forward = make_simplenet_forward(params)      # weights prepped once, jitted
    out = jax.block_until_ready(forward(x))

    ref_bf16 = reference_forward_bf16(x, params)  # same arithmetic as kernel
    ref_f32 = reference_forward_f32(x, params)    # original f32 model semantics

    assert out.shape == (batch, out_dim)
    assert jnp.allclose(out, ref_bf16, atol=1e-3, rtol=1e-3), \
        float(jnp.max(jnp.abs(out - ref_bf16)))
    # bf16 matmul inputs are an intentional accuracy trade-off vs the f32 model.
    assert jnp.allclose(out, ref_f32, atol=5e-2, rtol=5e-2), \
        float(jnp.max(jnp.abs(out - ref_f32)))

    print("KERNEL_OK")
</pallas_src>

<mosaic_0001>
module attributes {stable_mosaic.version = 11 : i64} {
  func.func @simplenet_kernel(%arg0: i32, %arg1: memref<256x16xf32, #tpu.memory_space<vmem>>, %arg2: memref<16x32xbf16, #tpu.memory_space<vmem>>, %arg3: memref<1x32xf32, #tpu.memory_space<vmem>>, %arg4: memref<32x32xbf16, #tpu.memory_space<vmem>>, %arg5: memref<1x32xf32, #tpu.memory_space<vmem>>, %arg6: memref<32x128xbf16, #tpu.memory_space<vmem>>, %arg7: memref<1x128xf32, #tpu.memory_space<vmem>>, %arg8: memref<256x128xf32, #tpu.memory_space<vmem>>) attributes {dimension_semantics = [#tpu.dimension_semantics<parallel>], iteration_bounds = array<i64: 1>, scalar_prefetch = 0 : i64, scratch_operands = 0 : i64, tpu.core_type = #tpu.core_type<tc>, window_params = [{transform_indices = @transform_0, window_bounds = array<i64: 256, 16>}, {pipeline_mode = #tpu.pipeline_mode<synchronous>, transform_indices = @transform_1, window_bounds = array<i64: 16, 32>}, {pipeline_mode = #tpu.pipeline_mode<synchronous>, transform_indices = @transform_2, window_bounds = array<i64: 1, 32>}, {pipeline_mode = #tpu.pipeline_mode<synchronous>, transform_indices = @transform_3, window_bounds = array<i64: 32, 32>}, {pipeline_mode = #tpu.pipeline_mode<synchronous>, transform_indices = @transform_4, window_bounds = array<i64: 1, 32>}, {pipeline_mode = #tpu.pipeline_mode<synchronous>, transform_indices = @transform_5, window_bounds = array<i64: 32, 128>}, {pipeline_mode = #tpu.pipeline_mode<synchronous>, transform_indices = @transform_6, window_bounds = array<i64: 1, 128>}, {transform_indices = @transform_7, window_bounds = array<i64: 256, 128>}]} {
    %c0 = arith.constant 0 : index
    %c0_0 = arith.constant 0 : index
    %0 = vector.load %arg1[%c0, %c0_0] : memref<256x16xf32, #tpu.memory_space<vmem>>, vector<256x16xf32>
    %1 = arith.truncf %0 : vector<256x16xf32> to vector<256x16xbf16>
    %c0_1 = arith.constant 0 : index
    %c0_2 = arith.constant 0 : index
    %2 = vector.load %arg2[%c0_1, %c0_2] : memref<16x32xbf16, #tpu.memory_space<vmem>>, vector<16x32xbf16>
    %cst = arith.constant dense<0.000000e+00> : vector<256x32xf32>
    %3 = tpu.matmul %1, %2, %cst {dimension_numbers = #tpu.dot_dimension_numbers<[1], [0], [0], [1], [0, 0, 1, 1], [], []>} : vector<256x16xbf16>, vector<16x32xbf16>, vector<256x32xf32> -> vector<256x32xf32>
    %c0_3 = arith.constant 0 : index
    %c0_4 = arith.constant 0 : index
    %4 = vector.load %arg3[%c0_3, %c0_4] : memref<1x32xf32, #tpu.memory_space<vmem>>, vector<1x32xf32>
    %5 = vector.broadcast %4 : vector<1x32xf32> to vector<256x32xf32>
    %6 = arith.addf %3, %5 : vector<256x32xf32>
    %cst_5 = arith.constant 0.000000e+00 : f32
    %7 = vector.broadcast %cst_5 : f32 to vector<256x32xf32>
    %8 = arith.maximumf %6, %7 : vector<256x32xf32>
    %9 = arith.truncf %8 : vector<256x32xf32> to vector<256x32xbf16>
    %c0_6 = arith.constant 0 : index
    %c0_7 = arith.constant 0 : index
    %10 = vector.load %arg4[%c0_6, %c0_7] : memref<32x32xbf16, #tpu.memory_space<vmem>>, vector<32x32xbf16>
    %cst_8 = arith.constant dense<0.000000e+00> : vector<256x32xf32>
    %11 = tpu.matmul %9, %10, %cst_8 {dimension_numbers = #tpu.dot_dimension_numbers<[1], [0], [0], [1], [0, 0, 1, 1], [], []>} : vector<256x32xbf16>, vector<32x32xbf16>, vector<256x32xf32> -> vector<256x32xf32>
    %c0_9 = arith.constant 0 : index
    %c0_10 = arith.constant 0 : index
    %12 = vector.load %arg5[%c0_9, %c0_10] : memref<1x32xf32, #tpu.memory_space<vmem>>, vector<1x32xf32>
    %13 = vector.broadcast %12 : vector<1x32xf32> to vector<256x32xf32>
    %14 = arith.addf %11, %13 : vector<256x32xf32>
    %cst_11 = arith.constant 0.000000e+00 : f32
    %15 = vector.broadcast %cst_11 : f32 to vector<256x32xf32>
    %16 = arith.maximumf %14, %15 : vector<256x32xf32>
    %17 = arith.truncf %16 : vector<256x32xf32> to vector<256x32xbf16>
    %c0_12 = arith.constant 0 : index
    %c0_13 = arith.constant 0 : index
    %18 = vector.load %arg6[%c0_12, %c0_13] : memref<32x128xbf16, #tpu.memory_space<vmem>>, vector<32x128xbf16>
    %cst_14 = arith.constant dense<0.000000e+00> : vector<256x128xf32>
    %19 = tpu.matmul %17, %18, %cst_14 {dimension_numbers = #tpu.dot_dimension_numbers<[1], [0], [0], [1], [0, 0, 1, 1], [], []>} : vector<256x32xbf16>, vector<32x128xbf16>, vector<256x128xf32> -> vector<256x128xf32>
    %c0_15 = arith.constant 0 : index
    %c0_16 = arith.constant 0 : index
    %20 = vector.load %arg7[%c0_15, %c0_16] : memref<1x128xf32, #tpu.memory_space<vmem>>, vector<1x128xf32>
    %21 = vector.broadcast %20 : vector<1x128xf32> to vector<256x128xf32>
    %22 = arith.addf %19, %21 : vector<256x128xf32>
    %c0_17 = arith.constant 0 : index
    %c0_18 = arith.constant 0 : index
    %23 = vector.load %arg8[%c0_17, %c0_18] : memref<256x128xf32, #tpu.memory_space<vmem>>, vector<256x128xf32>
    tpu.vector_store %arg8[%c0_17, %c0_18], %22 {strides = array<i32>} : memref<256x128xf32, #tpu.memory_space<vmem>>, vector<256x128xf32>,
    return
  }
  func.func @transform_0(%arg0: i32) -> (i32, i32) {
    %c0_i32 = arith.constant 0 : i32
    %c0_i32_0 = arith.constant 0 : i32
    return %arg0, %c0_i32 : i32, i32
  }
  func.func @transform_1(%arg0: i32) -> (i32, i32) {
    %c0_i32 = arith.constant 0 : i32
    %c0_i32_0 = arith.constant 0 : i32
    %c0_i32_1 = arith.constant 0 : i32
    return %c0_i32, %c0_i32_0 : i32, i32
  }
  func.func @transform_2(%arg0: i32) -> (i32, i32) {
    %c0_i32 = arith.constant 0 : i32
    %c0_i32_0 = arith.constant 0 : i32
    %c0_i32_1 = arith.constant 0 : i32
    return %c0_i32, %c0_i32_0 : i32, i32
  }
  func.func @transform_3(%arg0: i32) -> (i32, i32) {
    %c0_i32 = arith.constant 0 : i32
    %c0_i32_0 = arith.constant 0 : i32
    %c0_i32_1 = arith.constant 0 : i32
    return %c0_i32, %c0_i32_0 : i32, i32
  }
  func.func @transform_4(%arg0: i32) -> (i32, i32) {
    %c0_i32 = arith.constant 0 : i32
    %c0_i32_0 = arith.constant 0 : i32
    %c0_i32_1 = arith.constant 0 : i32
    return %c0_i32, %c0_i32_0 : i32, i32
  }
  func.func @transform_5(%arg0: i32) -> (i32, i32) {
    %c0_i32 = arith.constant 0 : i32
    %c0_i32_0 = arith.constant 0 : i32
    %c0_i32_1 = arith.constant 0 : i32
    return %c0_i32, %c0_i32_0 : i32, i32
  }
  func.func @transform_6(%arg0: i32) -> (i32, i32) {
    %c0_i32 = arith.constant 0 : i32
    %c0_i32_0 = arith.constant 0 : i32
    %c0_i32_1 = arith.constant 0 : i32
    return %c0_i32, %c0_i32_0 : i32, i32
  }
  func.func @transform_7(%arg0: i32) -> (i32, i32) {
    %c0_i32 = arith.constant 0 : i32
    %c0_i32_0 = arith.constant 0 : i32
    return %arg0, %c0_i32 : i32, i32
  }
}

</mosaic_0001>

<llo_original>
// kernel: forward.1
$region0: #{forward.1}
  #allocation0 [shape = 'u32[]', space=smem, size = 0x4, offset = 0x4, fixed_abs, tag = 'smem constant byte address 0x4 - core index']
  #allocation1 [shape = 'u32[144,128]{1,0:T(1,128)}', space=vmem, size = 0x12000, scoped, tag = 'internal scratch']
  %s0 = inlined_call_operand.vmem [shape: f32[256,16], index: 0, kind: input, shape index: {}]
  %s1 = inlined_call_operand.vmem [shape: bf16[16,32], index: 1, kind: input, shape index: {}]
  %s2 = inlined_call_operand.vmem [shape: f32[1,32], index: 2, kind: input, shape index: {}]
  %s3 = inlined_call_operand.vmem [shape: bf16[32,32], index: 3, kind: input, shape index: {}]
  %s4 = inlined_call_operand.vmem [shape: f32[1,32], index: 4, kind: input, shape index: {}]
  %s5 = inlined_call_operand.vmem [shape: bf16[32,128], index: 5, kind: input, shape index: {}]
  %s6 = inlined_call_operand.vmem [shape: f32[1,128], index: 6, kind: input, shape index: {}]
  %s7 = inlined_call_operand.vmem [shape: f32[256,128], index: 7, kind: output, shape index: {}]
  %s8 = sld [smem:[#allocation0]]
  $region38: #{forward.1} parent=0
    _
  %s10 = ssub.s32 1, %s8
  %s11 = scalar_select 0, %s10, %s8
  // Predicated region
  $region2: #{forward.1} parent=0 // pred_check
    _
  $region3: #{forward.1} parent=0 // pred_check_branch
    %13 = sbr.rel (0) target = $region5
  $region4: #{forward.1} parent=0 // pred_region
    _
  $region5: #{forward.1} parent=0 // pred_fallthru
    _
  // Predicated region
  $region6: #{forward.1} parent=0 // pred_check
    _
  $region7: #{forward.1} parent=0 // pred_check_branch
    %15 = sbr.rel (0) target = $region9
  $region8: #{forward.1} parent=0 // pred_region
    _
  $region9: #{forward.1} parent=0 // pred_fallthru
    _
  // Predicated region
  $region10: #{forward.1} parent=0 // pred_check
    _
  $region11: #{forward.1} parent=0 // pred_check_branch
    %17 = sbr.rel (0) target = $region13
  $region12: #{forward.1} parent=0 // pred_region
    _
  $region13: #{forward.1} parent=0 // pred_fallthru
    _
  // Predicated region
  $region14: #{forward.1} parent=0 // pred_check
    _
  $region15: #{forward.1} parent=0 // pred_check_branch
    %19 = sbr.rel (0) target = $region17
  $region16: #{forward.1} parent=0 // pred_region
    _
  $region17: #{forward.1} parent=0 // pred_fallthru
    _
  // Predicated region
  $region18: #{forward.1} parent=0 // pred_check
    _
  $region19: #{forward.1} parent=0 // pred_check_branch
    %21 = sbr.rel (0) target = $region21
  $region20: #{forward.1} parent=0 // pred_region
    _
  $region21: #{forward.1} parent=0 // pred_fallthru
    _
  // Predicated region
  $region22: #{forward.1} parent=0 // pred_check
    _
  $region23: #{forward.1} parent=0 // pred_check_branch
    %23 = sbr.rel (0) target = $region25
  $region24: #{forward.1} parent=0 // pred_region
    _
  $region25: #{forward.1} parent=0 // pred_fallthru
    _
  // Predicated region
  $region26: #{forward.1} parent=0 // pred_check
    _
  $region27: #{forward.1} parent=0 // pred_check_branch
    %25 = sbr.rel (0) target = $region29
  $region28: #{forward.1} parent=0 // pred_region
    _
  $region29: #{forward.1} parent=0 // pred_fallthru
    _
  %v27 = vld [vmem:[%s0] sm:$0xff]
  %v28 = vld [vmem:[%s0 + $0x8] sm:$0xff]
  %v29 = vld [vmem:[%s0 + $0x10] sm:$0xff]
  %v30 = vld [vmem:[%s0 + $0x18] sm:$0xff]
  %v31 = vld [vmem:[%s0 + $0x20] sm:$0xff]
  %v32 = vld [vmem:[%s0 + $0x28] sm:$0xff]
  %v33 = vld [vmem:[%s0 + $0x30] sm:$0xff]
  %v34 = vld [vmem:[%s0 + $0x38] sm:$0xff]
  %v35 = vld [vmem:[%s0 + $0x40] sm:$0xff]
  %v36 = vld [vmem:[%s0 + $0x48] sm:$0xff]
  %v37 = vld [vmem:[%s0 + $0x50] sm:$0xff]
  %v38 = vld [vmem:[%s0 + $0x58] sm:$0xff]
  %v39 = vld [vmem:[%s0 + $0x60] sm:$0xff]
  %v40 = vld [vmem:[%s0 + $0x68] sm:$0xff]
  %v41 = vld [vmem:[%s0 + $0x70] sm:$0xff]
  %v42 = vld [vmem:[%s0 + $0x78] sm:$0xff]
  %v43 = vld [vmem:[%s0 + $0x80] sm:$0xff]
  %v44 = vld [vmem:[%s0 + $0x88] sm:$0xff]
  %v45 = vld [vmem:[%s0 + $0x90] sm:$0xff]
  %v46 = vld [vmem:[%s0 + $0x98] sm:$0xff]
  %v47 = vld [vmem:[%s0 + $0xa0] sm:$0xff]
  %v48 = vld [vmem:[%s0 + $0xa8] sm:$0xff]
  %v49 = vld [vmem:[%s0 + $0xb0] sm:$0xff]
  %v50 = vld [vmem:[%s0 + $0xb8] sm:$0xff]
  %v51 = vld [vmem:[%s0 + $0xc0] sm:$0xff]
  %v52 = vld [vmem:[%s0 + $0xc8] sm:$0xff]
  %v53 = vld [vmem:[%s0 + $0xd0] sm:$0xff]
  %v54 = vld [vmem:[%s0 + $0xd8] sm:$0xff]
  %v55 = vld [vmem:[%s0 + $0xe0] sm:$0xff]
  %v56 = vld [vmem:[%s0 + $0xe8] sm:$0xff]
  %v57 = vld [vmem:[%s0 + $0xf0] sm:$0xff]
  %v58 = vld [vmem:[%s0 + $0xf8] sm:$0xff]
  %v59 = vpack.c.bf16 %v28, %v27
  %v60 = vpack.c.bf16 %v30, %v29
  %v61 = vpack.c.bf16 %v32, %v31
  %v62 = vpack.c.bf16 %v34, %v33
  %v63 = vpack.c.bf16 %v36, %v35
  %v64 = vpack.c.bf16 %v38, %v37
  %v65 = vpack.c.bf16 %v40, %v39
  %v66 = vpack.c.bf16 %v42, %v41
  %v67 = vpack.c.bf16 %v44, %v43
  %v68 = vpack.c.bf16 %v46, %v45
  %v69 = vpack.c.bf16 %v48, %v47
  %v70 = vpack.c.bf16 %v50, %v49
  %v71 = vpack.c.bf16 %v52, %v51
  %v72 = vpack.c.bf16 %v54, %v53
  %v73 = vpack.c.bf16 %v56, %v55
  %v74 = vpack.c.bf16 %v58, %v57
  %v75 = vld [vmem:[%s1] sm:$0xf]
  %v76 = vld [vmem:[%s1 + $0x4] sm:$0xf]
  %v77 = vld [vmem:[%s2] sm:$0x1]
  %v79 = vlaneseq
  %v80 = vshrl.u32 %v79, 7
  %v81 = vsub.s32 0, %v80
  %v82 = vrot.slane %v77, %v81
  %v86 = vunpack.c.l.b16 %v75
  %v87 = vunpack.c.l.b16 %v76
  %v88 = vpack.c.b16 %v87, %v86
  %vm90 = vcmask 130048
  %v92 = vsel %vm90, %v59, 0
  %v95 = vsel %vm90, %v60, 0
  %v98 = vsel %vm90, %v61, 0
  %v101 = vsel %vm90, %v62, 0
  %v104 = vsel %vm90, %v63, 0
  %v107 = vsel %vm90, %v64, 0
  %v110 = vsel %vm90, %v65, 0
  %v113 = vsel %vm90, %v66, 0
  %v116 = vsel %vm90, %v67, 0
  %v119 = vsel %vm90, %v68, 0
  %v122 = vsel %vm90, %v69, 0
  %v125 = vsel %vm90, %v70, 0
  %v128 = vsel %vm90, %v71, 0
  %v131 = vsel %vm90, %v72, 0
  %v134 = vsel %vm90, %v73, 0
  %v137 = vsel %vm90, %v74, 0
  %139 = vmatprep.subr.bf16.mxu0 0
  %140 = vmatpush1.bf16.msra.mxu0 %v88
  %141 = vmatprep.subr.bf16.mxu0 0
  %142 = vmatpush1.bf16.msra.mxu0 0
  %143 = vmatprep.subr.bf16.mxu0 0
  %144 = vmatpush1.bf16.msra.mxu0 0
  %145 = vmatprep.subr.bf16.mxu0 0
  %146 = vmatpush1.bf16.msra.mxu0 0
  %147 = vmatprep.subr.bf16.mxu0 0
  %148 = vmatpush1.bf16.msra.mxu0 0
  %149 = vmatprep.subr.bf16.mxu0 0
  %150 = vmatpush1.bf16.msra.mxu0 0
  %151 = vmatprep.subr.bf16.mxu0 0
  %152 = vmatpush1.bf16.msra.mxu0 0
  %153 = vmatprep.subr.bf16.mxu0 0
  %154 = vmatpush1.bf16.msra.mxu0 0
  %155 = vmatprep.subr.bf16.mxu0 0
  %156 = vmatpush1.bf16.msra.mxu0 0
  %157 = vmatprep.subr.bf16.mxu0 0
  %158 = vmatpush1.bf16.msra.mxu0 0
  %159 = vmatprep.subr.bf16.mxu0 0
  %160 = vmatpush1.bf16.msra.mxu0 0
  %161 = vmatprep.subr.bf16.mxu0 0
  %162 = vmatpush1.bf16.msra.mxu0 0
  %163 = vmatprep.subr.bf16.mxu0 0
  %164 = vmatpush1.bf16.msra.mxu0 0
  %165 = vmatprep.subr.bf16.mxu0 0
  %166 = vmatpush1.bf16.msra.mxu0 0
  %167 = vmatprep.subr.bf16.mxu0 0
  %168 = vmatpush1.bf16.msra.mxu0 0
  %169 = vmatprep.subr.bf16.mxu0 0
  %170 = vmatpush1.bf16.msra.mxu0 0
  %171 = vmatprep.mubr.bf16.mxu0 0
  %172 = vmatmul.mubr.bf16.gmra.mrb[0].mxu0 %v92
  %v173 = vpop.f32.mrb[0].mxu0
  %v174 = vadd.f32 %v82, %v173
  %v175 = vpop.f32.mrb[0].mxu0
  %v176 = vpop.f32.mrb[0].mxu0
  %v177 = vadd.f32 %v82, %v176
  %v178 = vpop.f32.mrb[0].mxu0
  %179 = vmatprep.mubr.bf16.mxu0 0
  %180 = vmatmul.mubr.bf16.gmra.mrb[0].mxu0 %v95
  %v181 = vpop.f32.mrb[0].mxu0
  %v182 = vadd.f32 %v82, %v181
  %v183 = vpop.f32.mrb[0].mxu0
  %v184 = vpop.f32.mrb[0].mxu0
  %v185 = vadd.f32 %v82, %v184
  %v186 = vpop.f32.mrb[0].mxu0
  %187 = vmatprep.mubr.bf16.mxu0 0
  %188 = vmatmul.mubr.bf16.gmra.mrb[0].mxu0 %v98
  %v189 = vpop.f32.mrb[0].mxu0
  %v190 = vadd.f32 %v82, %v189
  %v191 = vpop.f32.mrb[0].mxu0
  %v192 = vpop.f32.mrb[0].mxu0
  %v193 = vadd.f32 %v82, %v192
  %v194 = vpop.f32.mrb[0].mxu0
  %195 = vmatprep.mubr.bf16.mxu0 0
  %196 = vmatmul.mubr.bf16.gmra.mrb[0].mxu0 %v101
  %v197 = vpop.f32.mrb[0].mxu0
  %v198 = vadd.f32 %v82, %v197
  %v199 = vpop.f32.mrb[0].mxu0
  %v200 = vpop.f32.mrb[0].mxu0
  %v201 = vadd.f32 %v82, %v200
  %v202 = vpop.f32.mrb[0].mxu0
  %203 = vmatprep.mubr.bf16.mxu0 0
  %204 = vmatmul.mubr.bf16.gmra.mrb[0].mxu0 %v104
  %v205 = vpop.f32.mrb[0].mxu0
  %v206 = vadd.f32 %v82, %v205
  %v207 = vpop.f32.mrb[0].mxu0
  %v208 = vpop.f32.mrb[0].mxu0
  %v209 = vadd.f32 %v82, %v208
  %v210 = vpop.f32.mrb[0].mxu0
  %211 = vmatprep.mubr.bf16.mxu0 0
  %212 = vmatmul.mubr.bf16.gmra.mrb[0].mxu0 %v107
  %v213 = vpop.f32.mrb[0].mxu0
  %v214 = vadd.f32 %v82, %v213
  %v215 = vpop.f32.mrb[0].mxu0
  %v216 = vpop.f32.mrb[0].mxu0
  %v217 = vadd.f32 %v82, %v216
  %v218 = vpop.f32.mrb[0].mxu0
  %219 = vmatprep.mubr.bf16.mxu0 0
  %220 = vmatmul.mubr.bf16.gmra.mrb[0].mxu0 %v110
  %v221 = vpop.f32.mrb[0].mxu0
  %v222 = vadd.f32 %v82, %v221
  %v223 = vpop.f32.mrb[0].mxu0
  %v224 = vpop.f32.mrb[0].mxu0
  %v225 = vadd.f32 %v82, %v224
  %v226 = vpop.f32.mrb[0].mxu0
  %227 = vmatprep.mubr.bf16.mxu0 0
  %228 = vmatmul.mubr.bf16.gmra.mrb[0].mxu0 %v113
  %v229 = vpop.f32.mrb[0].mxu0
  %v230 = vadd.f32 %v82, %v229
  %v231 = vpop.f32.mrb[0].mxu0
  %v232 = vpop.f32.mrb[0].mxu0
  %v233 = vadd.f32 %v82, %v232
  %v234 = vpop.f32.mrb[0].mxu0
  %235 = vmatprep.mubr.bf16.mxu0 0
  %236 = vmatmul.mubr.bf16.gmra.mrb[0].mxu0 %v116
  %v237 = vpop.f32.mrb[0].mxu0
  %v238 = vadd.f32 %v82, %v237
  %v239 = vpop.f32.mrb[0].mxu0
  %v240 = vpop.f32.mrb[0].mxu0
  %v241 = vadd.f32 %v82, %v240
  %v242 = vpop.f32.mrb[0].mxu0
  %243 = vmatprep.mubr.bf16.mxu0 0
  %244 = vmatmul.mubr.bf16.gmra.mrb[0].mxu0 %v119
  %v245 = vpop.f32.mrb[0].mxu0
  %v246 = vadd.f32 %v82, %v245
  %v247 = vpop.f32.mrb[0].mxu0
  %v248 = vpop.f32.mrb[0].mxu0
  %v249 = vadd.f32 %v82, %v248
  %v250 = vpop.f32.mrb[0].mxu0
  %251 = vmatprep.mubr.bf16.mxu0 0
  %252 = vmatmul.mubr.bf16.gmra.mrb[0].mxu0 %v122
  %v253 = vpop.f32.mrb[0].mxu0
  %v254 = vadd.f32 %v82, %v253
  %v255 = vpop.f32.mrb[0].mxu0
  %v256 = vpop.f32.mrb[0].mxu0
  %v257 = vadd.f32 %v82, %v256
  %v258 = vpop.f32.mrb[0].mxu0
  %259 = vmatprep.mubr.bf16.mxu0 0
  %260 = vmatmul.mubr.bf16.gmra.mrb[0].mxu0 %v125
  %v261 = vpop.f32.mrb[0].mxu0
  %v262 = vadd.f32 %v82, %v261
  %v263 = vpop.f32.mrb[0].mxu0
  %v264 = vpop.f32.mrb[0].mxu0
  %v265 = vadd.f32 %v82, %v264
  %v266 = vpop.f32.mrb[0].mxu0
  %267 = vmatprep.mubr.bf16.mxu0 0
  %268 = vmatmul.mubr.bf16.gmra.mrb[0].mxu0 %v128
  %v269 = vpop.f32.mrb[0].mxu0
  %v270 = vadd.f32 %v82, %v269
  %v271 = vpop.f32.mrb[0].mxu0
  %v272 = vpop.f32.mrb[0].mxu0
  %v273 = vadd.f32 %v82, %v272
  %v274 = vpop.f32.mrb[0].mxu0
  %275 = vmatprep.mubr.bf16.mxu0 0
  %276 = vmatmul.mubr.bf16.gmra.mrb[0].mxu0 %v131
  %v277 = vpop.f32.mrb[0].mxu0
  %v278 = vadd.f32 %v82, %v277
  %v279 = vpop.f32.mrb[0].mxu0
  %v280 = vpop.f32.mrb[0].mxu0
  %v281 = vadd.f32 %v82, %v280
  %v282 = vpop.f32.mrb[0].mxu0
  %283 = vmatprep.mubr.bf16.mxu0 0
  %284 = vmatmul.mubr.bf16.gmra.mrb[0].mxu0 %v134
  %v285 = vpop.f32.mrb[0].mxu0
  %v286 = vadd.f32 %v82, %v285
  %v287 = vpop.f32.mrb[0].mxu0
  %v288 = vpop.f32.mrb[0].mxu0
  %v289 = vadd.f32 %v82, %v288
  %v290 = vpop.f32.mrb[0].mxu0
  %291 = vmatprep.mubr.bf16.mxu0 0
  %292 = vmatmul.mubr.bf16.gmra.mrb[0].mxu0 %v137
  %v293 = vpop.f32.mrb[0].mxu0
  %v294 = vadd.f32 %v82, %v293
  %v295 = vpop.f32.mrb[0].mxu0
  %v296 = vpop.f32.mrb[0].mxu0
  %v297 = vadd.f32 %v82, %v296
  %v298 = vpop.f32.mrb[0].mxu0
  %299 = vdwg.mxu0
  %v300 = vmax.f32 %v174, 0.0
  %v301 = vmax.f32 %v177, 0.0
  %v302 = vmax.f32 %v182, 0.0
  %v303 = vmax.f32 %v185, 0.0
  %v304 = vmax.f32 %v190, 0.0
  %v305 = vmax.f32 %v193, 0.0
  %v306 = vmax.f32 %v198, 0.0
  %v307 = vmax.f32 %v201, 0.0
  %v308 = vmax.f32 %v206, 0.0
  %v309 = vmax.f32 %v209, 0.0
  %v310 = vmax.f32 %v214, 0.0
  %v311 = vmax.f32 %v217, 0.0
  %v312 = vmax.f32 %v222, 0.0
  %v313 = vmax.f32 %v225, 0.0
  %v314 = vmax.f32 %v230, 0.0
  %v315 = vmax.f32 %v233, 0.0
  %v316 = vmax.f32 %v238, 0.0
  %v317 = vmax.f32 %v241, 0.0
  %v318 = vmax.f32 %v246, 0.0
  %v319 = vmax.f32 %v249, 0.0
  %v320 = vmax.f32 %v254, 0.0
  %v321 = vmax.f32 %v257, 0.0
  %v322 = vmax.f32 %v262, 0.0
  %v323 = vmax.f32 %v265, 0.0
  %v324 = vmax.f32 %v270, 0.0
  %v325 = vmax.f32 %v273, 0.0
  %v326 = vmax.f32 %v278, 0.0
  %v327 = vmax.f32 %v281, 0.0
  %v328 = vmax.f32 %v286, 0.0
  %v329 = vmax.f32 %v289, 0.0
  %v330 = vmax.f32 %v294, 0.0
  %v331 = vmax.f32 %v297, 0.0
  %v332 = vpack.c.bf16 %v301, %v300
  %v333 = vpack.c.bf16 %v303, %v302
  %v334 = vpack.c.bf16 %v305, %v304
  %v335 = vpack.c.bf16 %v307, %v306
  %v336 = vpack.c.bf16 %v309, %v308
  %v337 = vpack.c.bf16 %v311, %v310
  %v338 = vpack.c.bf16 %v313, %v312
  %v339 = vpack.c.bf16 %v315, %v314
  %v340 = vpack.c.bf16 %v317, %v316
  %v341 = vpack.c.bf16 %v319, %v318
  %v342 = vpack.c.bf16 %v321, %v320
  %v343 = vpack.c.bf16 %v323, %v322
  %v344 = vpack.c.bf16 %v325, %v324
  %v345 = vpack.c.bf16 %v327, %v326
  %v346 = vpack.c.bf16 %v329, %v328
  %v347 = vpack.c.bf16 %v331, %v330
  %v348 = vld [vmem:[%s3] sm:$0xf]
  %v349 = vld [vmem:[%s3 + $0x4] sm:$0xf]
  %v350 = vld [vmem:[%s3 + $0x8] sm:$0xf]
  %v351 = vld [vmem:[%s3 + $0xc] sm:$0xf]
  %v352 = vld [vmem:[%s4] sm:$0x1]
  %v354 = vlaneseq
  %v355 = vshrl.u32 %v354, 7
  %v356 = vsub.s32 0, %v355
  %v357 = vrot.slane %v352, %v356
  %v363 = vunpack.c.l.b16 %v348
  %v364 = vunpack.c.l.b16 %v349
  %v365 = vunpack.c.l.b16 %v350
  %v366 = vunpack.c.l.b16 %v351
  %v367 = vpack.c.b16 %v364, %v363
  %v368 = vpack.c.b16 %v366, %v365
  %vm371 = vcmask 261120
  %v373 = vsel %vm371, %v332, 0
  %v376 = vsel %vm371, %v333, 0
  %v379 = vsel %vm371, %v334, 0
  %v382 = vsel %vm371, %v335, 0
  %v385 = vsel %vm371, %v336, 0
  %v388 = vsel %vm371, %v337, 0
  %v391 = vsel %vm371, %v338, 0
  %v394 = vsel %vm371, %v339, 0
  %v397 = vsel %vm371, %v340, 0
  %v400 = vsel %vm371, %v341, 0
  %v403 = vsel %vm371, %v342, 0
  %v406 = vsel %vm371, %v343, 0
  %v409 = vsel %vm371, %v344, 0
  %v412 = vsel %vm371, %v345, 0
  %v415 = vsel %vm371, %v346, 0
  %v418 = vsel %vm371, %v347, 0
  %420 = vmatprep.subr.bf16.mxu0 0
  %421 = vmatpush1.bf16.msra.mxu0 %v367
  %422 = vmatprep.subr.bf16.mxu0 0
  %423 = vmatpush1.bf16.msra.mxu0 %v368
  %424 = vmatprep.subr.bf16.mxu0 0
  %425 = vmatpush1.bf16.msra.mxu0 0
  %426 = vmatprep.subr.bf16.mxu0 0
  %427 = vmatpush1.bf16.msra.mxu0 0
  %428 = vmatprep.subr.bf16.mxu0 0
  %429 = vmatpush1.bf16.msra.mxu0 0
  %430 = vmatprep.subr.bf16.mxu0 0
  %431 = vmatpush1.bf16.msra.mxu0 0
  %432 = vmatprep.subr.bf16.mxu0 0
  %433 = vmatpush1.bf16.msra.mxu0 0
  %434 = vmatprep.subr.bf16.mxu0 0
  %435 = vmatpush1.bf16.msra.mxu0 0
  %436 = vmatprep.subr.bf16.mxu0 0
  %437 = vmatpush1.bf16.msra.mxu0 0
  %438 = vmatprep.subr.bf16.mxu0 0
  %439 = vmatpush1.bf16.msra.mxu0 0
  %440 = vmatprep.subr.bf16.mxu0 0
  %441 = vmatpush1.bf16.msra.mxu0 0
  %442 = vmatprep.subr.bf16.mxu0 0
  %443 = vmatpush1.bf16.msra.mxu0 0
  %444 = vmatprep.subr.bf16.mxu0 0
  %445 = vmatpush1.bf16.msra.mxu0 0
  %446 = vmatprep.subr.bf16.mxu0 0
  %447 = vmatpush1.bf16.msra.mxu0 0
  %448 = vmatprep.subr.bf16.mxu0 0
  %449 = vmatpush1.bf16.msra.mxu0 0
  %450 = vmatprep.subr.bf16.mxu0 0
  %451 = vmatpush1.bf16.msra.mxu0 0
  %452 = vmatprep.mubr.bf16.mxu0 0
  %453 = vmatmul.mubr.bf16.gmra.mrb[0].mxu0 %v373
  %v454 = vpop.f32.mrb[0].mxu0
  %v455 = vadd.f32 %v357, %v454
  %v456 = vpop.f32.mrb[0].mxu0
  %v457 = vpop.f32.mrb[0].mxu0
  %v458 = vadd.f32 %v357, %v457
  %v459 = vpop.f32.mrb[0].mxu0
  %460 = vmatprep.mubr.bf16.mxu0 0
  %461 = vmatmul.mubr.bf16.gmra.mrb[0].mxu0 %v376
  %v462 = vpop.f32.mrb[0].mxu0
  %v463 = vadd.f32 %v357, %v462
  %v464 = vpop.f32.mrb[0].mxu0
  %v465 = vpop.f32.mrb[0].mxu0
  %v466 = vadd.f32 %v357, %v465
  %v467 = vpop.f32.mrb[0].mxu0
  %468 = vmatprep.mubr.bf16.mxu0 0
  %469 = vmatmul.mubr.bf16.gmra.mrb[0].mxu0 %v379
  %v470 = vpop.f32.mrb[0].mxu0
  %v471 = vadd.f32 %v357, %v470
  %v472 = vpop.f32.mrb[0].mxu0
  %v473 = vpop.f32.mrb[0].mxu0
  %v474 = vadd.f32 %v357, %v473
  %v475 = vpop.f32.mrb[0].mxu0
  %476 = vmatprep.mubr.bf16.mxu0 0
  %477 = vmatmul.mubr.bf16.gmra.mrb[0].mxu0 %v382
  %v478 = vpop.f32.mrb[0].mxu0
  %v479 = vadd.f32 %v357, %v478
  %v480 = vpop.f32.mrb[0].mxu0
  %v481 = vpop.f32.mrb[0].mxu0
  %v482 = vadd.f32 %v357, %v481
  %v483 = vpop.f32.mrb[0].mxu0
  %484 = vmatprep.mubr.bf16.mxu0 0
  %485 = vmatmul.mubr.bf16.gmra.mrb[0].mxu0 %v385
  %v486 = vpop.f32.mrb[0].mxu0
  %v487 = vadd.f32 %v357, %v486
  %v488 = vpop.f32.mrb[0].mxu0
  %v489 = vpop.f32.mrb[0].mxu0
  %v490 = vadd.f32 %v357, %v489
  %v491 = vpop.f32.mrb[0].mxu0
  %492 = vmatprep.mubr.bf16.mxu0 0
  %493 = vmatmul.mubr.bf16.gmra.mrb[0].mxu0 %v388
  %v494 = vpop.f32.mrb[0].mxu0
  %v495 = vadd.f32 %v357, %v494
  %v496 = vpop.f32.mrb[0].mxu0
  %v497 = vpop.f32.mrb[0].mxu0
  %v498 = vadd.f32 %v357, %v497
  %v499 = vpop.f32.mrb[0].mxu0
  %500 = vmatprep.mubr.bf16.mxu0 0
  %501 = vmatmul.mubr.bf16.gmra.mrb[0].mxu0 %v391
  %v502 = vpop.f32.mrb[0].mxu0
  %v503 = vadd.f32 %v357, %v502
  %v504 = vpop.f32.mrb[0].mxu0
  %v505 = vpop.f32.mrb[0].mxu0
  %v506 = vadd.f32 %v357, %v505
  %v507 = vpop.f32.mrb[0].mxu0
  %508 = vmatprep.mubr.bf16.mxu0 0
  %509 = vmatmul.mubr.bf16.gmra.mrb[0].mxu0 %v394
  %v510 = vpop.f32.mrb[0].mxu0
  %v511 = vadd.f32 %v357, %v510
  %v512 = vpop.f32.mrb[0].mxu0
  %v513 = vpop.f32.mrb[0].mxu0
  %v514 = vadd.f32 %v357, %v513
  %v515 = vpop.f32.mrb[0].mxu0
  %516 = vmatprep.mubr.bf16.mxu0 0
  %517 = vmatmul.mubr.bf16.gmra.mrb[0].mxu0 %v397
  %v518 = vpop.f32.mrb[0].mxu0
  %v519 = vadd.f32 %v357, %v518
  %v520 = vpop.f32.mrb[0].mxu0
  %v521 = vpop.f32.mrb[0].mxu0
  %v522 = vadd.f32 %v357, %v521
  %v523 = vpop.f32.mrb[0].mxu0
  %524 = vmatprep.mubr.bf16.mxu0 0
  %525 = vmatmul.mubr.bf16.gmra.mrb[0].mxu0 %v400
  %v526 = vpop.f32.mrb[0].mxu0
  %v527 = vadd.f32 %v357, %v526
  %v528 = vpop.f32.mrb[0].mxu0
  %v529 = vpop.f32.mrb[0].mxu0
  %v530 = vadd.f32 %v357, %v529
  %v531 = vpop.f32.mrb[0].mxu0
  %532 = vmatprep.mubr.bf16.mxu0 0
  %533 = vmatmul.mubr.bf16.gmra.mrb[0].mxu0 %v403
  %v534 = vpop.f32.mrb[0].mxu0
  %v535 = vadd.f32 %v357, %v534
  %v536 = vpop.f32.mrb[0].mxu0
  %v537 = vpop.f32.mrb[0].mxu0
  %v538 = vadd.f32 %v357, %v537
  %v539 = vpop.f32.mrb[0].mxu0
  %540 = vmatprep.mubr.bf16.mxu0 0
  %541 = vmatmul.mubr.bf16.gmra.mrb[0].mxu0 %v406
  %v542 = vpop.f32.mrb[0].mxu0
  %v543 = vadd.f32 %v357, %v542
  %v544 = vpop.f32.mrb[0].mxu0
  %v545 = vpop.f32.mrb[0].mxu0
  %v546 = vadd.f32 %v357, %v545
  %v547 = vpop.f32.mrb[0].mxu0
  %548 = vmatprep.mubr.bf16.mxu0 0
  %549 = vmatmul.mubr.bf16.gmra.mrb[0].mxu0 %v409
  %v550 = vpop.f32.mrb[0].mxu0
  %v551 = vadd.f32 %v357, %v550
  %v552 = vpop.f32.mrb[0].mxu0
  %v553 = vpop.f32.mrb[0].mxu0
  %v554 = vadd.f32 %v357, %v553
  %v555 = vpop.f32.mrb[0].mxu0
  %556 = vmatprep.mubr.bf16.mxu0 0
  %557 = vmatmul.mubr.bf16.gmra.mrb[0].mxu0 %v412
  %v558 = vpop.f32.mrb[0].mxu0
  %v559 = vadd.f32 %v357, %v558
  %v560 = vpop.f32.mrb[0].mxu0
  %v561 = vpop.f32.mrb[0].mxu0
  %v562 = vadd.f32 %v357, %v561
  %v563 = vpop.f32.mrb[0].mxu0
  %564 = vmatprep.mubr.bf16.mxu0 0
  %565 = vmatmul.mubr.bf16.gmra.mrb[0].mxu0 %v415
  %v566 = vpop.f32.mrb[0].mxu0
  %v567 = vadd.f32 %v357, %v566
  %v568 = vpop.f32.mrb[0].mxu0
  %v569 = vpop.f32.mrb[0].mxu0
  %v570 = vadd.f32 %v357, %v569
  %v571 = vpop.f32.mrb[0].mxu0
  %572 = vmatprep.mubr.bf16.mxu0 0
  %573 = vmatmul.mubr.bf16.gmra.mrb[0].mxu0 %v418
  %v574 = vpop.f32.mrb[0].mxu0
  %v575 = vadd.f32 %v357, %v574
  %v576 = vpop.f32.mrb[0].mxu0
  %v577 = vpop.f32.mrb[0].mxu0
  %v578 = vadd.f32 %v357, %v577
  %v579 = vpop.f32.mrb[0].mxu0
  %580 = vdwg.mxu0
  %v581 = vmax.f32 %v455, 0.0
  %v582 = vmax.f32 %v458, 0.0
  %v583 = vmax.f32 %v463, 0.0
  %v584 = vmax.f32 %v466, 0.0
  %v585 = vmax.f32 %v471, 0.0
  %v586 = vmax.f32 %v474, 0.0
  %v587 = vmax.f32 %v479, 0.0
  %v588 = vmax.f32 %v482, 0.0
  %v589 = vmax.f32 %v487, 0.0
  %v590 = vmax.f32 %v490, 0.0
  %v591 = vmax.f32 %v495, 0.0
  %v592 = vmax.f32 %v498, 0.0
  %v593 = vmax.f32 %v503, 0.0
  %v594 = vmax.f32 %v506, 0.0
  %v595 = vmax.f32 %v511, 0.0
  %v596 = vmax.f32 %v514, 0.0
  %v597 = vmax.f32 %v519, 0.0
  %v598 = vmax.f32 %v522, 0.0
  %v599 = vmax.f32 %v527, 0.0
  %v600 = vmax.f32 %v530, 0.0
  %v601 = vmax.f32 %v535, 0.0
  %v602 = vmax.f32 %v538, 0.0
  %v603 = vmax.f32 %v543, 0.0
  %v604 = vmax.f32 %v546, 0.0
  %v605 = vmax.f32 %v551, 0.0
  %v606 = vmax.f32 %v554, 0.0
  %v607 = vmax.f32 %v559, 0.0
  %v608 = vmax.f32 %v562, 0.0
  %v609 = vmax.f32 %v567, 0.0
  %v610 = vmax.f32 %v570, 0.0
  %v611 = vmax.f32 %v575, 0.0
  %v612 = vmax.f32 %v578, 0.0
  %v613 = vpack.c.bf16 %v582, %v581
  %v614 = vpack.c.bf16 %v584, %v583
  %v615 = vpack.c.bf16 %v586, %v585
  %v616 = vpack.c.bf16 %v588, %v587
  %v617 = vpack.c.bf16 %v590, %v589
  %v618 = vpack.c.bf16 %v592, %v591
  %v619 = vpack.c.bf16 %v594, %v593
  %v620 = vpack.c.bf16 %v596, %v595
  %v621 = vpack.c.bf16 %v598, %v597
  %v622 = vpack.c.bf16 %v600, %v599
  %v623 = vpack.c.bf16 %v602, %v601
  %v624 = vpack.c.bf16 %v604, %v603
  %v625 = vpack.c.bf16 %v606, %v605
  %v626 = vpack.c.bf16 %v608, %v607
  %v627 = vpack.c.bf16 %v610, %v609
  %v628 = vpack.c.bf16 %v612, %v611
  %v629 = vld [vmem:[%s5] sm:$0xf]
  %v630 = vld [vmem:[%s5 + $0x4] sm:$0xf]
  %v631 = vld [vmem:[%s5 + $0x8] sm:$0xf]
  %v632 = vld [vmem:[%s5 + $0xc] sm:$0xf]
  %v633 = vld [vmem:[%s6] sm:$0x1]
  %v635 = vlaneseq
  %v636 = vshrl.u32 %v635, 7
  %v637 = vsub.s32 0, %v636
  %v638 = vrot.slane %v633, %v637
  %v644 = vunpack.c.l.b16 %v629
  %v645 = vunpack.c.l.b16 %v630
  %v646 = vunpack.c.l.b16 %v631
  %v647 = vunpack.c.l.b16 %v632
  %v648 = vpack.c.b16 %v645, %v644
  %v649 = vpack.c.b16 %v647, %v646
  %v653 = vsel %vm371, %v613, 0
  %v656 = vsel %vm371, %v614, 0
  %v659 = vsel %vm371, %v615, 0
  %v662 = vsel %vm371, %v616, 0
  %v665 = vsel %vm371, %v617, 0
  %v668 = vsel %vm371, %v618, 0
  %v671 = vsel %vm371, %v619, 0
  %v674 = vsel %vm371, %v620, 0
  %v677 = vsel %vm371, %v621, 0
  %v680 = vsel %vm371, %v622, 0
  %v683 = vsel %vm371, %v623, 0
  %v686 = vsel %vm371, %v624, 0
  %v689 = vsel %vm371, %v625, 0
  %v692 = vsel %vm371, %v626, 0
  %v695 = vsel %vm371, %v627, 0
  %v698 = vsel %vm371, %v628, 0
  %700 = vmatprep.subr.bf16.mxu0 0
  %701 = vmatpush1.bf16.msra.mxu0 %v648
  %702 = vmatprep.subr.bf16.mxu0 0
  %703 = vmatpush1.bf16.msra.mxu0 %v649
  %704 = vmatprep.subr.bf16.mxu0 0
  %705 = vmatpush1.bf16.msra.mxu0 0
  %706 = vmatprep.subr.bf16.mxu0 0
  %707 = vmatpush1.bf16.msra.mxu0 0
  %708 = vmatprep.subr.bf16.mxu0 0
  %709 = vmatpush1.bf16.msra.mxu0 0
  %710 = vmatprep.subr.bf16.mxu0 0
  %711 = vmatpush1.bf16.msra.mxu0 0
  %712 = vmatprep.subr.bf16.mxu0 0
  %713 = vmatpush1.bf16.msra.mxu0 0
  %714 = vmatprep.subr.bf16.mxu0 0
  %715 = vmatpush1.bf16.msra.mxu0 0
  %716 = vmatprep.subr.bf16.mxu0 0
  %717 = vmatpush1.bf16.msra.mxu0 0
  %718 = vmatprep.subr.bf16.mxu0 0
  %719 = vmatpush1.bf16.msra.mxu0 0
  %720 = vmatprep.subr.bf16.mxu0 0
  %721 = vmatpush1.bf16.msra.mxu0 0
  %722 = vmatprep.subr.bf16.mxu0 0
  %723 = vmatpush1.bf16.msra.mxu0 0
  %724 = vmatprep.subr.bf16.mxu0 0
  %725 = vmatpush1.bf16.msra.mxu0 0
  %726 = vmatprep.subr.bf16.mxu0 0
  %727 = vmatpush1.bf16.msra.mxu0 0
  %728 = vmatprep.subr.bf16.mxu0 0
  %729 = vmatpush1.bf16.msra.mxu0 0
  %730 = vmatprep.subr.bf16.mxu0 0
  %731 = vmatpush1.bf16.msra.mxu0 0
  %732 = vmatprep.mubr.bf16.mxu0 0
  %733 = vmatmul.mubr.bf16.gmra.mrb[0].mxu0 %v653
  %v734 = vpop.f32.mrb[0].mxu0
  %v735 = vadd.f32 %v638, %v734
  %v736 = vpop.f32.mrb[0].mxu0
  %v737 = vpop.f32.mrb[0].mxu0
  %v738 = vadd.f32 %v638, %v737
  %v739 = vpop.f32.mrb[0].mxu0
  %740 = vmatprep.mubr.bf16.mxu0 0
  %741 = vmatmul.mubr.bf16.gmra.mrb[0].mxu0 %v656
  %v742 = vpop.f32.mrb[0].mxu0
  %v743 = vadd.f32 %v638, %v742
  %v744 = vpop.f32.mrb[0].mxu0
  %v745 = vpop.f32.mrb[0].mxu0
  %v746 = vadd.f32 %v638, %v745
  %v747 = vpop.f32.mrb[0].mxu0
  %748 = vmatprep.mubr.bf16.mxu0 0
  %749 = vmatmul.mubr.bf16.gmra.mrb[0].mxu0 %v659
  %v750 = vpop.f32.mrb[0].mxu0
  %v751 = vadd.f32 %v638, %v750
  %v752 = vpop.f32.mrb[0].mxu0
  %v753 = vpop.f32.mrb[0].mxu0
  %v754 = vadd.f32 %v638, %v753
  %v755 = vpop.f32.mrb[0].mxu0
  %756 = vmatprep.mubr.bf16.mxu0 0
  %757 = vmatmul.mubr.bf16.gmra.mrb[0].mxu0 %v662
  %v758 = vpop.f32.mrb[0].mxu0
  %v759 = vadd.f32 %v638, %v758
  %v760 = vpop.f32.mrb[0].mxu0
  %v761 = vpop.f32.mrb[0].mxu0
  %v762 = vadd.f32 %v638, %v761
  %v763 = vpop.f32.mrb[0].mxu0
  %764 = vmatprep.mubr.bf16.mxu0 0
  %765 = vmatmul.mubr.bf16.gmra.mrb[0].mxu0 %v665
  %v766 = vpop.f32.mrb[0].mxu0
  %v767 = vadd.f32 %v638, %v766
  %v768 = vpop.f32.mrb[0].mxu0
  %v769 = vpop.f32.mrb[0].mxu0
  %v770 = vadd.f32 %v638, %v769
  %v771 = vpop.f32.mrb[0].mxu0
  %772 = vmatprep.mubr.bf16.mxu0 0
  %773 = vmatmul.mubr.bf16.gmra.mrb[0].mxu0 %v668
  %v774 = vpop.f32.mrb[0].mxu0
  %v775 = vadd.f32 %v638, %v774
  %v776 = vpop.f32.mrb[0].mxu0
  %v777 = vpop.f32.mrb[0].mxu0
  %v778 = vadd.f32 %v638, %v777
  %v779 = vpop.f32.mrb[0].mxu0
  %780 = vmatprep.mubr.bf16.mxu0 0
  %781 = vmatmul.mubr.bf16.gmra.mrb[0].mxu0 %v671
  %v782 = vpop.f32.mrb[0].mxu0
  %v783 = vadd.f32 %v638, %v782
  %v784 = vpop.f32.mrb[0].mxu0
  %v785 = vpop.f32.mrb[0].mxu0
  %v786 = vadd.f32 %v638, %v785
  %v787 = vpop.f32.mrb[0].mxu0
  %788 = vmatprep.mubr.bf16.mxu0 0
  %789 = vmatmul.mubr.bf16.gmra.mrb[0].mxu0 %v674
  %v790 = vpop.f32.mrb[0].mxu0
  %v791 = vadd.f32 %v638, %v790
  %v792 = vpop.f32.mrb[0].mxu0
  %v793 = vpop.f32.mrb[0].mxu0
  %v794 = vadd.f32 %v638, %v793
  %v795 = vpop.f32.mrb[0].mxu0
  %796 = vmatprep.mubr.bf16.mxu0 0
  %797 = vmatmul.mubr.bf16.gmra.mrb[0].mxu0 %v677
  %v798 = vpop.f32.mrb[0].mxu0
  %v799 = vadd.f32 %v638, %v798
  %v800 = vpop.f32.mrb[0].mxu0
  %v801 = vpop.f32.mrb[0].mxu0
  %v802 = vadd.f32 %v638, %v801
  %v803 = vpop.f32.mrb[0].mxu0
  %804 = vmatprep.mubr.bf16.mxu0 0
  %805 = vmatmul.mubr.bf16.gmra.mrb[0].mxu0 %v680
  %v806 = vpop.f32.mrb[0].mxu0
  %v807 = vadd.f32 %v638, %v806
  %v808 = vpop.f32.mrb[0].mxu0
  %v809 = vpop.f32.mrb[0].mxu0
  %v810 = vadd.f32 %v638, %v809
  %v811 = vpop.f32.mrb[0].mxu0
  %812 = vmatprep.mubr.bf16.mxu0 0
  %813 = vmatmul.mubr.bf16.gmra.mrb[0].mxu0 %v683
  %v814 = vpop.f32.mrb[0].mxu0
  %v815 = vadd.f32 %v638, %v814
  %v816 = vpop.f32.mrb[0].mxu0
  %v817 = vpop.f32.mrb[0].mxu0
  %v818 = vadd.f32 %v638, %v817
  %v819 = vpop.f32.mrb[0].mxu0
  %820 = vmatprep.mubr.bf16.mxu0 0
  %821 = vmatmul.mubr.bf16.gmra.mrb[0].mxu0 %v686
  %v822 = vpop.f32.mrb[0].mxu0
  %v823 = vadd.f32 %v638, %v822
  %v824 = vpop.f32.mrb[0].mxu0
  %v825 = vpop.f32.mrb[0].mxu0
  %v826 = vadd.f32 %v638, %v825
  %v827 = vpop.f32.mrb[0].mxu0
  %828 = vmatprep.mubr.bf16.mxu0 0
  %829 = vmatmul.mubr.bf16.gmra.mrb[0].mxu0 %v689
  %v830 = vpop.f32.mrb[0].mxu0
  %v831 = vadd.f32 %v638, %v830
  %v832 = vpop.f32.mrb[0].mxu0
  %v833 = vpop.f32.mrb[0].mxu0
  %v834 = vadd.f32 %v638, %v833
  %v835 = vpop.f32.mrb[0].mxu0
  %836 = vmatprep.mubr.bf16.mxu0 0
  %837 = vmatmul.mubr.bf16.gmra.mrb[0].mxu0 %v692
  %v838 = vpop.f32.mrb[0].mxu0
  %v839 = vadd.f32 %v638, %v838
  %v840 = vpop.f32.mrb[0].mxu0
  %v841 = vpop.f32.mrb[0].mxu0
  %v842 = vadd.f32 %v638, %v841
  %v843 = vpop.f32.mrb[0].mxu0
  %844 = vmatprep.mubr.bf16.mxu0 0
  %845 = vmatmul.mubr.bf16.gmra.mrb[0].mxu0 %v695
  %v846 = vpop.f32.mrb[0].mxu0
  %v847 = vadd.f32 %v638, %v846
  %v848 = vpop.f32.mrb[0].mxu0
  %v849 = vpop.f32.mrb[0].mxu0
  %v850 = vadd.f32 %v638, %v849
  %v851 = vpop.f32.mrb[0].mxu0
  %852 = vmatprep.mubr.bf16.mxu0 0
  %853 = vmatmul.mubr.bf16.gmra.mrb[0].mxu0 %v698
  %v854 = vpop.f32.mrb[0].mxu0
  %v855 = vadd.f32 %v638, %v854
  %v856 = vpop.f32.mrb[0].mxu0
  %v857 = vpop.f32.mrb[0].mxu0
  %v858 = vadd.f32 %v638, %v857
  %v859 = vpop.f32.mrb[0].mxu0
  %860 = vdwg.mxu0
  %861 = vst [vmem:[%s7] sm:$0xff] %v735
  %862 = vst [vmem:[%s7 + $0x8] sm:$0xff] %v738
  %863 = vst [vmem:[%s7 + $0x10] sm:$0xff] %v743
  %864 = vst [vmem:[%s7 + $0x18] sm:$0xff] %v746
  %865 = vst [vmem:[%s7 + $0x20] sm:$0xff] %v751
  %866 = vst [vmem:[%s7 + $0x28] sm:$0xff] %v754
  %867 = vst [vmem:[%s7 + $0x30] sm:$0xff] %v759
  %868 = vst [vmem:[%s7 + $0x38] sm:$0xff] %v762
  %869 = vst [vmem:[%s7 + $0x40] sm:$0xff] %v767
  %870 = vst [vmem:[%s7 + $0x48] sm:$0xff] %v770
  %871 = vst [vmem:[%s7 + $0x50] sm:$0xff] %v775
  %872 = vst [vmem:[%s7 + $0x58] sm:$0xff] %v778
  %873 = vst [vmem:[%s7 + $0x60] sm:$0xff] %v783
  %874 = vst [vmem:[%s7 + $0x68] sm:$0xff] %v786
  %875 = vst [vmem:[%s7 + $0x70] sm:$0xff] %v791
  %876 = vst [vmem:[%s7 + $0x78] sm:$0xff] %v794
  %877 = vst [vmem:[%s7 + $0x80] sm:$0xff] %v799
  %878 = vst [vmem:[%s7 + $0x88] sm:$0xff] %v802
  %879 = vst [vmem:[%s7 + $0x90] sm:$0xff] %v807
  %880 = vst [vmem:[%s7 + $0x98] sm:$0xff] %v810
  %881 = vst [vmem:[%s7 + $0xa0] sm:$0xff] %v815
  %882 = vst [vmem:[%s7 + $0xa8] sm:$0xff] %v818
  %883 = vst [vmem:[%s7 + $0xb0] sm:$0xff] %v823
  %884 = vst [vmem:[%s7 + $0xb8] sm:$0xff] %v826
  %885 = vst [vmem:[%s7 + $0xc0] sm:$0xff] %v831
  %886 = vst [vmem:[%s7 + $0xc8] sm:$0xff] %v834
  %887 = vst [vmem:[%s7 + $0xd0] sm:$0xff] %v839
  %888 = vst [vmem:[%s7 + $0xd8] sm:$0xff] %v842
  %889 = vst [vmem:[%s7 + $0xe0] sm:$0xff] %v847
  %890 = vst [vmem:[%s7 + $0xe8] sm:$0xff] %v850
  %891 = vst [vmem:[%s7 + $0xf0] sm:$0xff] %v855
  %892 = vst [vmem:[%s7 + $0xf8] sm:$0xff] %v858
  // Predicated region
  $region30: #{forward.1} parent=0 // pred_check
    _
  $region31: #{forward.1} parent=0 // pred_check_branch
    %894 = sbr.rel (0) target = $region33
  $region32: #{forward.1} parent=0 // pred_region
    _
  $region33: #{forward.1} parent=0 // pred_fallthru
    _
  // Predicated region
  $region34: #{forward.1} parent=0 // pred_check
    _
  $region35: #{forward.1} parent=0 // pred_check_branch
    %896 = sbr.rel (0) target = $region37
  $region36: #{forward.1} parent=0 // pred_region
    _
  $region37: #{forward.1} parent=0 // pred_fallthru
    _

</llo_original>
